<compile_context>
chip_gen: v5e
topology: v5e:2x2
jax: 0.10.0
libtpu: 0.0.40
codegen_flags: <defaults>
</compile_context>

<pallas_src>
import functools

import numpy as np
import jax
import jax.numpy as jnp
from jax.experimental import pallas as pl
from jax.experimental.pallas import tpu as pltpu


def _largest_aligned_divisor(total, align, cap):
    """Largest d with d % align == 0, total % d == 0, d <= cap (or None)."""
    if total % align != 0 or cap < align:
        return None
    m = total // align
    for q in range(min(m, cap // align), 0, -1):
        if m % q == 0:
            return align * q
    return None


def _complex_to_interleaved_f32(x):
    """complex64 (...) -> f32 (..., 2) [re, im] pairs; zero-copy when possible."""
    try:
        return jax.lax.bitcast_convert_type(x, jnp.float32)
    except Exception:
        # Backend rejects bitcasting complex dtypes: one fused interleave pass.
        return jnp.stack([jnp.real(x), jnp.imag(x)], axis=-1).astype(jnp.float32)


def _interleaved_f32_to_complex(x):
    """f32 (..., 2) [re, im] pairs -> complex64 (...); zero-copy when possible."""
    try:
        return jax.lax.bitcast_convert_type(x, jnp.complex64)
    except Exception:
        return jax.lax.complex(x[..., 0], x[..., 1])


def _focus_error_kernel(thr, coef_ref, r2_ref, offs_ref, u_ref, o_ref):
    """One grid step: (R, TN) slab of the interleaved (B*C, 2*H*W) field."""
    tn = u_ref.shape[1]

    coef = coef_ref[...]                      # (R, 1)  per-row phase coefficient
    r2 = r2_ref[...]                          # (1, TN) x^2+y^2, duplicated per pair
    offs = offs_ref[...]                      # (1, TN) [pi/2, 0, pi/2, 0, ...]

    # Single transcendental per lane: sin(phi + pi/2) = cos(phi) on real lanes,
    # sin(phi) on imag lanes.
    psi = coef * r2 + offs                    # (R, TN)
    g = jnp.sin(psi)                          # even lanes: cos ; odd lanes: sin

    if thr is not None:
        # TODO(synk): circular_pupil() source not given; assuming the standard
        # hard circular aperture (x^2 + y^2) <= (D/2)^2, folded into g.
        inside = r2 <= jnp.float32(thr)       # (1, TN), identical within a pair
        g = jnp.where(inside, g, 0.0)

    even = offs > 0.0                         # (1, TN) lane parity (real lanes)
    v = u_ref[...]                            # (R, TN) interleaved [re, im, ...]

    # Pair-local shuffles on the (otherwise idle) XLU:
    #   prv(a)[i] = a[i-1]   nxt(a)[i] = a[i+1]   (jnp.roll semantics)
    nxt = lambda a: pltpu.roll(a, tn - 1, axis=1)
    prv = lambda a: pltpu.roll(a, 1, axis=1)

    c_dup = jnp.where(even, g, prv(g))        # cos duplicated over each pair
    s_sgn = jnp.where(even, -nxt(g), g)       # -sin on real lanes, +sin on imag
    swap = jnp.where(even, nxt(v), prv(v))    # [im, re] per pair

    # (re + i*im) * (cos + i*sin), pupil already folded into g.
    o_ref[...] = v * c_dup + swap * s_sgn


def focusing_error_phase_mask(field, lamb0, defocus, x_grid, y_grid, *,
                              focal_length, refractive_idx=1.0, D=None):
    """field: complex64 (B, C, H, W); lamb0/defocus: f32 (C,);
    x_grid/y_grid: f32 (H, W).  Returns complex64 (B, C, H, W)."""
    B, C, H, W = field.shape
    N = H * W
    BC = B * C
    TWO_N = 2 * N

    lamb0 = jnp.asarray(lamb0, jnp.float32)
    defocus = jnp.asarray(defocus, jnp.float32)

    # phi[b*C+c, pixel] = coef[c] * (x^2 + y^2)
    k = (2.0 * np.pi * refractive_idx) / lamb0                      # (C,)
    coef_c = ((-0.5) * (1.0 / defocus - 1.0 / focal_length) * k).astype(jnp.float32)
    coef_rows = jnp.broadcast_to(coef_c[None, :], (B, C)).reshape(BC, 1)

    r2 = (x_grid.astype(jnp.float32) ** 2
          + y_grid.astype(jnp.float32) ** 2).reshape(N)
    r2_dup = jnp.stack([r2, r2], axis=-1).reshape(1, TWO_N)         # pair-duplicated
    offs = jnp.asarray(np.tile(np.array([np.pi / 2, 0.0], np.float32), N)
                       ).reshape(1, TWO_N)

    # Interleaved f32 view of the complex field (zero-copy when possible).
    u = _complex_to_interleaved_f32(field).reshape(BC, TWO_N)

    # ---- tile selection: exact divisors (no padding, no de-pad slice) --------
    # rows: multiple of 8 (sublane) up to 256; lanes: multiple of 256 (lane
    # dense AND re/im pair aligned), sized for ~4 MiB streamed blocks.  The
    # full-extent block is the always-legal fallback for ragged shapes.
    R = _largest_aligned_divisor(BC, 8, 256) or BC
    lane_cap = max(256, ((4 << 20) // (4 * R)) // 256 * 256)
    TN = _largest_aligned_divisor(TWO_N, 256, lane_cap) or TWO_N
    grid = (BC // R, TWO_N // TN)

    # 1 streamed input + 1 streamed output, double-buffered, plus small shared
    # coef/r2/offs blocks and Mosaic scratch headroom; capped per chip.
    block_bytes = R * TN * 4
    vmem_need = 2 * 2 * block_bytes + 4 * (8 * TN * 4) + (4 << 20)
    try:
        vmem_cap = int(pltpu.get_tpu_info().vmem_capacity_bytes)
    except Exception:
        vmem_cap = 64 << 20
    vmem_limit = int(min(max(vmem_need, 32 << 20), (vmem_cap * 3) // 4))

    kern = functools.partial(_focus_error_kernel,
                             None if D is None else float((0.5 * D) ** 2))

    out = pl.pallas_call(
        kern,
        out_shape=jax.ShapeDtypeStruct((BC, TWO_N), jnp.float32),
        grid_spec=pltpu.PrefetchScalarGridSpec(
            num_scalar_prefetch=0,
            grid=grid,
            in_specs=[
                pl.BlockSpec((R, 1), lambda i, j: (i, 0)),     # per-row coef
                pl.BlockSpec((1, TN), lambda i, j: (0, j)),    # r^2 (pair-dup)
                pl.BlockSpec((1, TN), lambda i, j: (0, j)),    # +pi/2 lane offsets
                pl.BlockSpec((R, TN), lambda i, j: (i, j)),    # field (interleaved)
            ],
            out_specs=pl.BlockSpec((R, TN), lambda i, j: (i, j)),
        ),
        compiler_params=pltpu.CompilerParams(
            dimension_semantics=("parallel", "parallel"),
            vmem_limit_bytes=vmem_limit),
    )(coef_rows, r2_dup, offs, u)

    return _interleaved_f32_to_complex(out.reshape(B, C, H, W, 2))


def _reference(field, lamb0, defocus, x_grid, y_grid, *,
               focal_length, refractive_idx=1.0, D=None):
    """Plain-JAX reference mirroring the PyTorch forward."""
    r2 = x_grid[None] ** 2 + y_grid[None] ** 2                       # (1,H,W)
    ple = -0.5 * (1.0 / defocus[:, None, None] - 1.0 / focal_length) * r2
    k = 2.0 * np.pi * refractive_idx / lamb0[:, None, None]
    phase_error = k * ple                                            # (C,H,W)
    phase = jnp.exp(1j * phase_error.astype(jnp.complex64))          # (C,H,W)
    if D is not None:
        mask = ((x_grid ** 2 + y_grid ** 2) <= (0.5 * D) ** 2).astype(jnp.float32)
        field = field * mask[None, None, :, :]
    return field * phase[None]                                       # (B,C,H,W)


if __name__ == "__main__":
    # Module config (small, deterministic)
    B, C, H, W = 2, 4, 16, 16
    refractive_idx = 1.0
    focal_length = 5e-3
    D = 100e-6
    pitch = 8e-6

    lamb0 = jnp.array([450e-9, 520e-9, 532e-9, 638e-9], jnp.float32)    # (C,)
    defocus = jnp.array([4.0e-3, 4.5e-3, 5.5e-3, 6.0e-3], jnp.float32)  # (C,)

    key = jax.random.PRNGKey(0)
    k_re, k_im = jax.random.split(key)

    # Field: complex64 NCHW
    field = (jax.random.normal(k_re, (B, C, H, W), jnp.float32)
             + 1j * jax.random.normal(k_im, (B, C, H, W), jnp.float32)
             ).astype(jnp.complex64)

    # Physical coordinate grids, shape (H, W)
    xs = (jnp.arange(W, dtype=jnp.float32) - (W - 1) / 2.0) * pitch
    ys = (jnp.arange(H, dtype=jnp.float32) - (H - 1) / 2.0) * pitch
    x_grid, y_grid = jnp.meshgrid(xs, ys)       # both (H, W)

    fn = jax.jit(functools.partial(focusing_error_phase_mask,
                                   focal_length=focal_length,
                                   refractive_idx=refractive_idx, D=D))
    out = jax.block_until_ready(fn(field, lamb0, defocus, x_grid, y_grid))

    ref = _reference(field, lamb0, defocus, x_grid, y_grid,
                     focal_length=focal_length,
                     refractive_idx=refractive_idx, D=D)

    max_err = float(jnp.max(jnp.abs(out - ref)))
    assert out.shape == (B, C, H, W) and out.dtype == jnp.complex64
    assert max_err < 1e-3, f"mismatch vs reference: {max_err}"

    print("KERNEL_OK")
</pallas_src>

<mosaic_0001>
module attributes {stable_mosaic.version = 11 : i64} {
  func.func @_focus_error_kernel(%arg0: i32, %arg1: i32, %arg2: memref<8x1xf32, #tpu.memory_space<vmem>>, %arg3: memref<1x512xf32, #tpu.memory_space<vmem>>, %arg4: memref<1x512xf32, #tpu.memory_space<vmem>>, %arg5: memref<8x512xf32, #tpu.memory_space<vmem>>, %arg6: memref<8x512xf32, #tpu.memory_space<vmem>>) attributes {dimension_semantics = [#tpu.dimension_semantics<parallel>, #tpu.dimension_semantics<parallel>], iteration_bounds = array<i64: 1, 1>, scalar_prefetch = 0 : i64, scratch_operands = 0 : i64, tpu.core_type = #tpu.core_type<tc>, window_params = [{transform_indices = @transform_0, window_bounds = array<i64: 8, 1>}, {transform_indices = @transform_1, window_bounds = array<i64: 1, 512>}, {transform_indices = @transform_2, window_bounds = array<i64: 1, 512>}, {transform_indices = @transform_3, window_bounds = array<i64: 8, 512>}, {transform_indices = @transform_4, window_bounds = array<i64: 8, 512>}]} {
    %c0 = arith.constant 0 : index
    %c0_0 = arith.constant 0 : index
    %0 = vector.load %arg2[%c0, %c0_0] : memref<8x1xf32, #tpu.memory_space<vmem>>, vector<8x1xf32>
    %c0_1 = arith.constant 0 : index
    %c0_2 = arith.constant 0 : index
    %1 = vector.load %arg3[%c0_1, %c0_2] : memref<1x512xf32, #tpu.memory_space<vmem>>, vector<1x512xf32>
    %c0_3 = arith.constant 0 : index
    %c0_4 = arith.constant 0 : index
    %2 = vector.load %arg4[%c0_3, %c0_4] : memref<1x512xf32, #tpu.memory_space<vmem>>, vector<1x512xf32>
    %3 = vector.broadcast %0 : vector<8x1xf32> to vector<8x512xf32>
    %4 = vector.broadcast %1 : vector<1x512xf32> to vector<8x512xf32>
    %5 = arith.mulf %3, %4 : vector<8x512xf32>
    %6 = vector.broadcast %2 : vector<1x512xf32> to vector<8x512xf32>
    %7 = arith.addf %5, %6 : vector<8x512xf32>
    %8 = math.sin %7 : vector<8x512xf32>
    %cst = arith.constant 2.500000e-09 : f32
    %9 = vector.broadcast %cst : f32 to vector<1x512xf32>
    %10 = arith.cmpf ole, %1, %9 : vector<1x512xf32>
    %cst_5 = arith.constant 0.000000e+00 : f32
    %11 = vector.shape_cast %10 : vector<1x512xi1> to vector<1x512xi1>
    %12 = vector.broadcast %11 : vector<1x512xi1> to vector<8x512xi1>
    %13 = vector.broadcast %cst_5 : f32 to vector<8x512xf32>
    %14 = arith.select %12, %8, %13 : vector<8x512xi1>, vector<8x512xf32>
    %cst_6 = arith.constant 0.000000e+00 : f32
    %15 = vector.broadcast %cst_6 : f32 to vector<1x512xf32>
    %16 = arith.cmpf ogt, %2, %15 : vector<1x512xf32>
    %c0_7 = arith.constant 0 : index
    %c0_8 = arith.constant 0 : index
    %17 = vector.load %arg5[%c0_7, %c0_8] : memref<8x512xf32, #tpu.memory_space<vmem>>, vector<8x512xf32>
    %c1_i32 = arith.constant 1 : i32
    %18 = tpu.dynamic_rotate %14 by %c1_i32 dim 1 : vector<8x512xf32>, i32 -> vector<8x512xf32>
    %19 = vector.shape_cast %16 : vector<1x512xi1> to vector<1x512xi1>
    %20 = vector.broadcast %19 : vector<1x512xi1> to vector<8x512xi1>
    %21 = arith.select %20, %14, %18 : vector<8x512xi1>, vector<8x512xf32>
    %c511_i32 = arith.constant 511 : i32
    %22 = tpu.dynamic_rotate %14 by %c511_i32 dim 1 : vector<8x512xf32>, i32 -> vector<8x512xf32>
    %cst_9 = arith.constant 0.000000e+00 : f32
    %23 = vector.broadcast %cst_9 : f32 to vector<8x512xf32>
    %24 = arith.subf %23, %22 : vector<8x512xf32>
    %25 = vector.shape_cast %16 : vector<1x512xi1> to vector<1x512xi1>
    %26 = vector.broadcast %25 : vector<1x512xi1> to vector<8x512xi1>
    %27 = arith.select %26, %24, %14 : vector<8x512xi1>, vector<8x512xf32>
    %c511_i32_10 = arith.constant 511 : i32
    %28 = tpu.dynamic_rotate %17 by %c511_i32_10 dim 1 : vector<8x512xf32>, i32 -> vector<8x512xf32>
    %c1_i32_11 = arith.constant 1 : i32
    %29 = tpu.dynamic_rotate %17 by %c1_i32_11 dim 1 : vector<8x512xf32>, i32 -> vector<8x512xf32>
    %30 = vector.shape_cast %16 : vector<1x512xi1> to vector<1x512xi1>
    %31 = vector.broadcast %30 : vector<1x512xi1> to vector<8x512xi1>
    %32 = arith.select %31, %28, %29 : vector<8x512xi1>, vector<8x512xf32>
    %33 = arith.mulf %17, %21 : vector<8x512xf32>
    %34 = arith.mulf %32, %27 : vector<8x512xf32>
    %35 = arith.addf %33, %34 : vector<8x512xf32>
    %c0_12 = arith.constant 0 : index
    %c0_13 = arith.constant 0 : index
    %36 = vector.load %arg6[%c0_12, %c0_13] : memref<8x512xf32, #tpu.memory_space<vmem>>, vector<8x512xf32>
    tpu.vector_store %arg6[%c0_12, %c0_13], %35 {strides = array<i32>} : memref<8x512xf32, #tpu.memory_space<vmem>>, vector<8x512xf32>,
    return
  }
  func.func @transform_0(%arg0: i32, %arg1: i32) -> (i32, i32) {
    %c0_i32 = arith.constant 0 : i32
    %c0_i32_0 = arith.constant 0 : i32
    return %arg0, %c0_i32 : i32, i32
  }
  func.func @transform_1(%arg0: i32, %arg1: i32) -> (i32, i32) {
    %c0_i32 = arith.constant 0 : i32
    %c0_i32_0 = arith.constant 0 : i32
    return %c0_i32, %arg1 : i32, i32
  }
  func.func @transform_2(%arg0: i32, %arg1: i32) -> (i32, i32) {
    %c0_i32 = arith.constant 0 : i32
    %c0_i32_0 = arith.constant 0 : i32
    return %c0_i32, %arg1 : i32, i32
  }
  func.func @transform_3(%arg0: i32, %arg1: i32) -> (i32, i32) {
    %c0_i32 = arith.constant 0 : i32
    return %arg0, %arg1 : i32, i32
  }
  func.func @transform_4(%arg0: i32, %arg1: i32) -> (i32, i32) {
    %c0_i32 = arith.constant 0 : i32
    return %arg0, %arg1 : i32, i32
  }
}

</mosaic_0001>

<llo_original>
// kernel: custom-call.1
$region0: #{custom-call.1}
  %s0 = inlined_call_operand.hbm [shape: c64[2,4,16,16], index: 0, kind: input, shape index: {}]
  %s1 = inlined_call_operand.vmem [shape: f32[2,4,16,16], index: 1, kind: output, shape index: {}]
  %s2 = scalar_lea.hbm %s0, 128
  $region1: #{custom-call.1} parent=0
    #allocation0 [shape = 's32[1]{0}', space=sflag, size = 0x4, scoped, tag = 'scoped memory for custom-call.1']
    %3 = vsyncpa [#allocation0], 0
    %s5 = sshll.u32 %s2, 4
    %s6 = int_to_ptr.hbm [resolvable:$true] %s5
    %s7 = sshll.u32 %s1, 4
    %s8 = int_to_ptr.vmem [resolvable:$true] %s7
    %10 = dma.hbm_to_vmem [thread:$0]  %s6, 2048, %s8, [#allocation0]
    %12 = dma.done [#allocation0], 2048
    %13 = vsyncpa [#allocation0], 1

// kernel: custom-call
$region0: #{custom-call}
  %s0 = inlined_call_operand.hbm [shape: c64[2,4,16,16], index: 0, kind: input, shape index: {}]
  %s1 = inlined_call_operand.vmem [shape: f32[2,4,16,16], index: 1, kind: output, shape index: {}]
  $region1: #{custom-call} parent=0
    #allocation0 [shape = 's32[1]{0}', space=sflag, size = 0x4, scoped, tag = 'scoped memory for custom-call']
    %2 = vsyncpa [#allocation0], 0
    %s4 = sshll.u32 %s0, 4
    %s5 = int_to_ptr.hbm [resolvable:$true] %s4
    %s6 = sshll.u32 %s1, 4
    %s7 = int_to_ptr.vmem [resolvable:$true] %s6
    %9 = dma.hbm_to_vmem [thread:$0]  %s5, 2048, %s7, [#allocation0]
    %11 = dma.done [#allocation0], 2048
    %12 = vsyncpa [#allocation0], 1

// kernel: focusing_error_phase_mask.1
$region0: #{focusing_error_phase_mask.1}
  #allocation0 [shape = 'u32[]', space=smem, size = 0x4, offset = 0x4, fixed_abs, tag = 'smem constant byte address 0x4 - core index']
  #allocation1 [shape = 'u32[72,128]{1,0:T(1,128)}', space=vmem, size = 0x9000, scoped, tag = 'internal scratch']
  %s0 = inlined_call_operand.vmem [shape: f32[8,1], index: 0, kind: input, shape index: {}]
  %s1 = inlined_call_operand.vmem [shape: f32[1,512], index: 1, kind: input, shape index: {}]
  %s2 = inlined_call_operand.vmem [shape: f32[1,512], index: 2, kind: input, shape index: {}]
  %s3 = inlined_call_operand.vmem [shape: f32[8,512], index: 3, kind: input, shape index: {}]
  %s4 = inlined_call_operand.vmem [shape: f32[8,512], index: 4, kind: output, shape index: {}]
  %s5 = sld [smem:[#allocation0]]
  $region26: #{focusing_error_phase_mask.1} parent=0
    _
  %s7 = ssub.s32 1, %s5
  %s8 = scalar_select 0, %s7, %s5
  // Predicated region
  $region2: #{focusing_error_phase_mask.1} parent=0 // pred_check
    _
  $region3: #{focusing_error_phase_mask.1} parent=0 // pred_check_branch
    %10 = sbr.rel (0) target = $region5
  $region4: #{focusing_error_phase_mask.1} parent=0 // pred_region
    _
  $region5: #{focusing_error_phase_mask.1} parent=0 // pred_fallthru
    _
  // Predicated region
  $region6: #{focusing_error_phase_mask.1} parent=0 // pred_check
    _
  $region7: #{focusing_error_phase_mask.1} parent=0 // pred_check_branch
    %12 = sbr.rel (0) target = $region9
  $region8: #{focusing_error_phase_mask.1} parent=0 // pred_region
    _
  $region9: #{focusing_error_phase_mask.1} parent=0 // pred_fallthru
    _
  // Predicated region
  $region10: #{focusing_error_phase_mask.1} parent=0 // pred_check
    _
  $region11: #{focusing_error_phase_mask.1} parent=0 // pred_check_branch
    %14 = sbr.rel (0) target = $region13
  $region12: #{focusing_error_phase_mask.1} parent=0 // pred_region
    _
  $region13: #{focusing_error_phase_mask.1} parent=0 // pred_fallthru
    _
  // Predicated region
  $region14: #{focusing_error_phase_mask.1} parent=0 // pred_check
    _
  $region15: #{focusing_error_phase_mask.1} parent=0 // pred_check_branch
    %16 = sbr.rel (0) target = $region17
  $region16: #{focusing_error_phase_mask.1} parent=0 // pred_region
    _
  $region17: #{focusing_error_phase_mask.1} parent=0 // pred_fallthru
    _
  %v17 = vld [vmem:[%s0] sm:$0xff]
  %v18 = vld [vmem:[%s1] sm:$0xf]
  %v19 = vld [vmem:[%s2] sm:$0xf]
  %21 = vset.pattern.permute.xlu0 0
  %22 = vperm.xlu0 %21, %v17
  %v23 = vpop.permute.xlu0 %22
  %v26 = vperm.slane %v18, 0
  %v27 = vperm.slane %v18, 1
  %v28 = vperm.slane %v18, 2
  %v29 = vperm.slane %v18, 3
  %v34 = vmul.f32 %v23, %v26
  %v35 = vmul.f32 %v23, %v27
  %v36 = vmul.f32 %v23, %v28
  %v37 = vmul.f32 %v23, %v29
  %v39 = vperm.slane %v19, 0
  %v40 = vperm.slane %v19, 1
  %v41 = vperm.slane %v19, 2
  %v42 = vperm.slane %v19, 3
  %v47 = vadd.f32 %v34, %v39
  %v48 = vadd.f32 %v35, %v40
  %v49 = vadd.f32 %v36, %v41
  %v50 = vadd.f32 %v37, %v42
  %v51 = vand.u32 2147483647, %v47
  %vm52 = vcmp.le.f32.partialorder %v51, 0.7853982
  %vm53 = vcmp.lt.s32.totalorder %v47, 0
  %v54 = vand.u32 %v47, 2139095040
  %v55 = vshrl.u32 %v54, 23
  %v56 = vsub.s32 %v55, 127
  %v57 = vand.u32 2147483647, %v47
  %v58 = vand.u32 %v57, 8388607
  %v59 = vor.u32 %v58, 8388608
  %v60 = vsub.s32 0, %v59
  %v61 = vadd.s32 %v56, 1
  %vm62 = vcmp.gt.s32.totalorder %v61, 0
  %v63 = vsel %vm62, %v61, 0
  %v64 = vshrl.u32 %v63, 5
  %v65 = vand.u32 %v63, 31
  %v66 = vsub.s32 32, %v65
  %v67 = vshrl.u32 683565275, %v66
  %v68 = vshll.u32 683565275, %v65
  %v69 = vshrl.u32 2475754826, %v66
  %v70 = vor.u32 %v68, %v69
  %v71 = vshll.u32 2475754826, %v65
  %v72 = vshrl.u32 2131351028, %v66
  %v73 = vor.u32 %v71, %v72
  %v74 = vshll.u32 2131351028, %v65
  %v75 = vshrl.u32 2102212464, %v66
  %v76 = vor.u32 %v74, %v75
  %v77 = vshll.u32 2102212464, %v65
  %v78 = vshrl.u32 920167782, %v66
  %v79 = vor.u32 %v77, %v78
  %v80 = vshll.u32 920167782, %v65
  %v81 = vshrl.u32 1326507024, %v66
  %v82 = vor.u32 %v80, %v81
  %vm83 = vcmp.lt.s32.totalorder %v64, 1
  %vm84 = vcmp.lt.s32.totalorder %v64, 2
  %vm85 = vcmp.lt.s32.totalorder %v64, 3
  %vm86 = vcmp.lt.s32.totalorder %v64, 4
  %v87 = vsel %vm83, %v67, %v70
  %v88 = vsel %vm86, %v76, 2102212464
  %v89 = vsel %vm85, %v73, %v88
  %v90 = vsel %vm84, %v87, %v89
  %v91 = vsel %vm83, %v70, %v73
  %v92 = vsel %vm86, %v79, 920167782
  %v93 = vsel %vm85, %v76, %v92
  %v94 = vsel %vm84, %v91, %v93
  %v95 = vsel %vm83, %v73, %v76
  %v96 = vsel %vm86, %v82, 1326507024
  %v97 = vsel %vm85, %v79, %v96
  %v98 = vsel %vm84, %v95, %v97
  %v99 = vshll.u32 %v59, 8
  %v100 = vand.u32 %v99, 65535
  %v101 = vshrl.u32 %v99, 16
  %v102 = vand.u32 %v98, 65535
  %v103 = vshrl.u32 %v98, 16
  %v104 = vmul.u32 %v100, %v102
  %v105 = vmul.u32 %v100, %v103
  %v106 = vmul.u32 %v101, %v102
  %v107 = vmul.u32 %v101, %v103
  %v108 = vshll.u32 %v105, 16
  %v109 = vshrl.u32 %v105, 16
  %v110 = vshll.u32 %v106, 16
  %v111 = vshrl.u32 %v106, 16
  %vm112 = vc.u32 %v104, %v108
  %v113 = vsel %vm112, 1, 0
  %v114 = vadd.s32 %v104, %v108
  %v115 = vadd.s32 %v107, %v113
  %vm116 = vc.u32 %v114, %v110
  %v117 = vsel %vm116, 1, 0
  %v118 = vadd.s32 %v114, %v110
  %v119 = vadd.s32 %v115, %v117
  %v120 = vadd.s32 %v119, %v109
  %v121 = vadd.s32 %v120, %v111
  %v122 = vand.u32 %v99, 65535
  %v123 = vshrl.u32 %v99, 16
  %v124 = vand.u32 %v94, 65535
  %v125 = vshrl.u32 %v94, 16
  %v126 = vmul.u32 %v122, %v124
  %v127 = vmul.u32 %v122, %v125
  %v128 = vmul.u32 %v123, %v124
  %v129 = vmul.u32 %v123, %v125
  %v130 = vshll.u32 %v127, 16
  %v131 = vshrl.u32 %v127, 16
  %v132 = vshll.u32 %v128, 16
  %v133 = vshrl.u32 %v128, 16
  %vm134 = vc.u32 %v126, %v130
  %v135 = vsel %vm134, 1, 0
  %v136 = vadd.s32 %v126, %v130
  %v137 = vadd.s32 %v129, %v135
  %vm138 = vc.u32 %v136, %v132
  %v139 = vsel %vm138, 1, 0
  %v140 = vadd.s32 %v136, %v132
  %v141 = vadd.s32 %v137, %v139
  %v142 = vadd.s32 %v141, %v131
  %v143 = vadd.s32 %v142, %v133
  %v144 = vmul.u32 %v99, %v90
  %v145 = vadd.s32 %v121, %v140
  %vm146 = vc.u32 %v121, %v140
  %v147 = vadd.s32 %v143, 1
  %v148 = vsel %vm146, %v147, %v143
  %v149 = vadd.s32 %v144, %v148
  %v150 = vadd.s32 %v149, 536870912
  %v151 = vshrl.u32 %v150, 30
  %v152 = vshll.u32 %v151, 30
  %v153 = vsub.s32 %v149, %v152
  %vm154 = vcmp.lt.s32.totalorder %v153, 0
  %v155 = vsub.s32 0, %v153
  %v156 = vsel %vm154, %v155, %v153
  %v157 = vclz %v156
  %v158 = vsub.s32 %v157, 2
  %vm159 = vcmp.gt.s32.totalorder 0, %v158
  %v160 = vsel %vm159, 0, %v158
  %v161 = vsub.s32 32, %v160
  %v162 = vshll.u32 %v153, %v160
  %v163 = vshrl.u32 %v145, %v161
  %v164 = vor.u32 %v162, %v163
  %v165 = vsub.s32 4294967266, %v160
  %v166 = vadd.s32 %v165, 127
  %v167 = vshll.u32 %v166, 23
  %v168 = vor.u32 4788187, %v167
  %v169 = vand.u32 2147483647, %v168
  %v171 = vcvt.s32.f32 %v164
  %v172 = vmul.f32 %v171, %v169
  %v173 = vxor.u32 %v172, 2147483648
  %v174 = vsel %vm53, %v173, %v172
  %v175 = vsub.s32 4, %v151
  %v176 = vsel %vm53, %v175, %v151
  %v177 = vsel %vm52, %v47, %v174
  %v178 = vsel %vm52, 0, %v176
  %v179 = vmul.f32 %v177, %v177
  %v180 = vmul.f32 %v179, -0.001358992
  %v181 = vadd.f32 %v180, 0.041655596
  %v182 = vmul.f32 %v179, %v181
  %v183 = vadd.f32 %v182, -0.4999988
  %v184 = vmul.f32 %v179, %v183
  %v185 = vadd.f32 1.0, %v184
  %v186 = vmul.f32 %v177, %v177
  %v187 = vmul.f32 %v186, -0.00019511016
  %v188 = vadd.f32 %v187, 0.008332121
  %v189 = vmul.f32 %v186, %v188
  %v190 = vadd.f32 %v189, -0.16666654
  %v191 = vmul.f32 %v186, %v190
  %v192 = vadd.f32 %v191, 1.0
  %v193 = vmul.f32 %v192, %v177
  %vm194 = vweird.f32 %v47
  %v195 = vadd.s32 %v178, 3
  %v196 = vand.u32 %v195, 3
  %vm197 = vcmp.lt.s32.totalorder %v196, 2
  %vm198 = vcmp.eq.s32.totalorder %v196, 0
  %v199 = vxor.u32 %v193, 2147483648
  %v200 = vsel %vm198, %v185, %v199
  %vm201 = vcmp.eq.s32.totalorder %v196, 2
  %v202 = vxor.u32 %v185, 2147483648
  %v203 = vsel %vm201, %v202, %v193
  %v204 = vsel %vm197, %v200, %v203
  %v205 = vsel %vm194, nan, %v204
  %v206 = vand.u32 2147483647, %v48
  %vm207 = vcmp.le.f32.partialorder %v206, 0.7853982
  %vm208 = vcmp.lt.s32.totalorder %v48, 0
  %v209 = vand.u32 %v48, 2139095040
  %v210 = vshrl.u32 %v209, 23
  %v211 = vsub.s32 %v210, 127
  %v212 = vand.u32 2147483647, %v48
  %v213 = vand.u32 %v212, 8388607
  %v214 = vor.u32 %v213, 8388608
  %v215 = vsub.s32 0, %v214
  %v216 = vadd.s32 %v211, 1
  %vm217 = vcmp.gt.s32.totalorder %v216, 0
  %v218 = vsel %vm217, %v216, 0
  %v219 = vshrl.u32 %v218, 5
  %v220 = vand.u32 %v218, 31
  %v221 = vsub.s32 32, %v220
  %v222 = vshrl.u32 683565275, %v221
  %v223 = vshll.u32 683565275, %v220
  %v224 = vshrl.u32 2475754826, %v221
  %v225 = vor.u32 %v223, %v224
  %v226 = vshll.u32 2475754826, %v220
  %v227 = vshrl.u32 2131351028, %v221
  %v228 = vor.u32 %v226, %v227
  %v229 = vshll.u32 2131351028, %v220
  %v230 = vshrl.u32 2102212464, %v221
  %v231 = vor.u32 %v229, %v230
  %v232 = vshll.u32 2102212464, %v220
  %v233 = vshrl.u32 920167782, %v221
  %v234 = vor.u32 %v232, %v233
  %v235 = vshll.u32 920167782, %v220
  %v236 = vshrl.u32 1326507024, %v221
  %v237 = vor.u32 %v235, %v236
  %vm238 = vcmp.lt.s32.totalorder %v219, 1
  %vm239 = vcmp.lt.s32.totalorder %v219, 2
  %vm240 = vcmp.lt.s32.totalorder %v219, 3
  %vm241 = vcmp.lt.s32.totalorder %v219, 4
  %v242 = vsel %vm238, %v222, %v225
  %v243 = vsel %vm241, %v231, 2102212464
  %v244 = vsel %vm240, %v228, %v243
  %v245 = vsel %vm239, %v242, %v244
  %v246 = vsel %vm238, %v225, %v228
  %v247 = vsel %vm241, %v234, 920167782
  %v248 = vsel %vm240, %v231, %v247
  %v249 = vsel %vm239, %v246, %v248
  %v250 = vsel %vm238, %v228, %v231
  %v251 = vsel %vm241, %v237, 1326507024
  %v252 = vsel %vm240, %v234, %v251
  %v253 = vsel %vm239, %v250, %v252
  %v254 = vshll.u32 %v214, 8
  %v255 = vand.u32 %v254, 65535
  %v256 = vshrl.u32 %v254, 16
  %v257 = vand.u32 %v253, 65535
  %v258 = vshrl.u32 %v253, 16
  %v259 = vmul.u32 %v255, %v257
  %v260 = vmul.u32 %v255, %v258
  %v261 = vmul.u32 %v256, %v257
  %v262 = vmul.u32 %v256, %v258
  %v263 = vshll.u32 %v260, 16
  %v264 = vshrl.u32 %v260, 16
  %v265 = vshll.u32 %v261, 16
  %v266 = vshrl.u32 %v261, 16
  %vm267 = vc.u32 %v259, %v263
  %v268 = vsel %vm267, 1, 0
  %v269 = vadd.s32 %v259, %v263
  %v270 = vadd.s32 %v262, %v268
  %vm271 = vc.u32 %v269, %v265
  %v272 = vsel %vm271, 1, 0
  %v273 = vadd.s32 %v269, %v265
  %v274 = vadd.s32 %v270, %v272
  %v275 = vadd.s32 %v274, %v264
  %v276 = vadd.s32 %v275, %v266
  %v277 = vand.u32 %v254, 65535
  %v278 = vshrl.u32 %v254, 16
  %v279 = vand.u32 %v249, 65535
  %v280 = vshrl.u32 %v249, 16
  %v281 = vmul.u32 %v277, %v279
  %v282 = vmul.u32 %v277, %v280
  %v283 = vmul.u32 %v278, %v279
  %v284 = vmul.u32 %v278, %v280
  %v285 = vshll.u32 %v282, 16
  %v286 = vshrl.u32 %v282, 16
  %v287 = vshll.u32 %v283, 16
  %v288 = vshrl.u32 %v283, 16
  %vm289 = vc.u32 %v281, %v285
  %v290 = vsel %vm289, 1, 0
  %v291 = vadd.s32 %v281, %v285
  %v292 = vadd.s32 %v284, %v290
  %vm293 = vc.u32 %v291, %v287
  %v294 = vsel %vm293, 1, 0
  %v295 = vadd.s32 %v291, %v287
  %v296 = vadd.s32 %v292, %v294
  %v297 = vadd.s32 %v296, %v286
  %v298 = vadd.s32 %v297, %v288
  %v299 = vmul.u32 %v254, %v245
  %v300 = vadd.s32 %v276, %v295
  %vm301 = vc.u32 %v276, %v295
  %v302 = vadd.s32 %v298, 1
  %v303 = vsel %vm301, %v302, %v298
  %v304 = vadd.s32 %v299, %v303
  %v305 = vadd.s32 %v304, 536870912
  %v306 = vshrl.u32 %v305, 30
  %v307 = vshll.u32 %v306, 30
  %v308 = vsub.s32 %v304, %v307
  %vm309 = vcmp.lt.s32.totalorder %v308, 0
  %v310 = vsub.s32 0, %v308
  %v311 = vsel %vm309, %v310, %v308
  %v312 = vclz %v311
  %v313 = vsub.s32 %v312, 2
  %vm314 = vcmp.gt.s32.totalorder 0, %v313
  %v315 = vsel %vm314, 0, %v313
  %v316 = vsub.s32 32, %v315
  %v317 = vshll.u32 %v308, %v315
  %v318 = vshrl.u32 %v300, %v316
  %v319 = vor.u32 %v317, %v318
  %v320 = vsub.s32 4294967266, %v315
  %v321 = vadd.s32 %v320, 127
  %v322 = vshll.u32 %v321, 23
  %v323 = vor.u32 4788187, %v322
  %v324 = vand.u32 2147483647, %v323
  %v326 = vcvt.s32.f32 %v319
  %v327 = vmul.f32 %v326, %v324
  %v328 = vxor.u32 %v327, 2147483648
  %v329 = vsel %vm208, %v328, %v327
  %v330 = vsub.s32 4, %v306
  %v331 = vsel %vm208, %v330, %v306
  %v332 = vsel %vm207, %v48, %v329
  %v333 = vsel %vm207, 0, %v331
  %v334 = vmul.f32 %v332, %v332
  %v335 = vmul.f32 %v334, -0.001358992
  %v336 = vadd.f32 %v335, 0.041655596
  %v337 = vmul.f32 %v334, %v336
  %v338 = vadd.f32 %v337, -0.4999988
  %v339 = vmul.f32 %v334, %v338
  %v340 = vadd.f32 1.0, %v339
  %v341 = vmul.f32 %v332, %v332
  %v342 = vmul.f32 %v341, -0.00019511016
  %v343 = vadd.f32 %v342, 0.008332121
  %v344 = vmul.f32 %v341, %v343
  %v345 = vadd.f32 %v344, -0.16666654
  %v346 = vmul.f32 %v341, %v345
  %v347 = vadd.f32 %v346, 1.0
  %v348 = vmul.f32 %v347, %v332
  %vm349 = vweird.f32 %v48
  %v350 = vadd.s32 %v333, 3
  %v351 = vand.u32 %v350, 3
  %vm352 = vcmp.lt.s32.totalorder %v351, 2
  %vm353 = vcmp.eq.s32.totalorder %v351, 0
  %v354 = vxor.u32 %v348, 2147483648
  %v355 = vsel %vm353, %v340, %v354
  %vm356 = vcmp.eq.s32.totalorder %v351, 2
  %v357 = vxor.u32 %v340, 2147483648
  %v358 = vsel %vm356, %v357, %v348
  %v359 = vsel %vm352, %v355, %v358
  %v360 = vsel %vm349, nan, %v359
  %v361 = vand.u32 2147483647, %v49
  %vm362 = vcmp.le.f32.partialorder %v361, 0.7853982
  %vm363 = vcmp.lt.s32.totalorder %v49, 0
  %v364 = vand.u32 %v49, 2139095040
  %v365 = vshrl.u32 %v364, 23
  %v366 = vsub.s32 %v365, 127
  %v367 = vand.u32 2147483647, %v49
  %v368 = vand.u32 %v367, 8388607
  %v369 = vor.u32 %v368, 8388608
  %v370 = vsub.s32 0, %v369
  %v371 = vadd.s32 %v366, 1
  %vm372 = vcmp.gt.s32.totalorder %v371, 0
  %v373 = vsel %vm372, %v371, 0
  %v374 = vshrl.u32 %v373, 5
  %v375 = vand.u32 %v373, 31
  %v376 = vsub.s32 32, %v375
  %v377 = vshrl.u32 683565275, %v376
  %v378 = vshll.u32 683565275, %v375
  %v379 = vshrl.u32 2475754826, %v376
  %v380 = vor.u32 %v378, %v379
  %v381 = vshll.u32 2475754826, %v375
  %v382 = vshrl.u32 2131351028, %v376
  %v383 = vor.u32 %v381, %v382
  %v384 = vshll.u32 2131351028, %v375
  %v385 = vshrl.u32 2102212464, %v376
  %v386 = vor.u32 %v384, %v385
  %v387 = vshll.u32 2102212464, %v375
  %v388 = vshrl.u32 920167782, %v376
  %v389 = vor.u32 %v387, %v388
  %v390 = vshll.u32 920167782, %v375
  %v391 = vshrl.u32 1326507024, %v376
  %v392 = vor.u32 %v390, %v391
  %vm393 = vcmp.lt.s32.totalorder %v374, 1
  %vm394 = vcmp.lt.s32.totalorder %v374, 2
  %vm395 = vcmp.lt.s32.totalorder %v374, 3
  %vm396 = vcmp.lt.s32.totalorder %v374, 4
  %v397 = vsel %vm393, %v377, %v380
  %v398 = vsel %vm396, %v386, 2102212464
  %v399 = vsel %vm395, %v383, %v398
  %v400 = vsel %vm394, %v397, %v399
  %v401 = vsel %vm393, %v380, %v383
  %v402 = vsel %vm396, %v389, 920167782
  %v403 = vsel %vm395, %v386, %v402
  %v404 = vsel %vm394, %v401, %v403
  %v405 = vsel %vm393, %v383, %v386
  %v406 = vsel %vm396, %v392, 1326507024
  %v407 = vsel %vm395, %v389, %v406
  %v408 = vsel %vm394, %v405, %v407
  %v409 = vshll.u32 %v369, 8
  %v410 = vand.u32 %v409, 65535
  %v411 = vshrl.u32 %v409, 16
  %v412 = vand.u32 %v408, 65535
  %v413 = vshrl.u32 %v408, 16
  %v414 = vmul.u32 %v410, %v412
  %v415 = vmul.u32 %v410, %v413
  %v416 = vmul.u32 %v411, %v412
  %v417 = vmul.u32 %v411, %v413
  %v418 = vshll.u32 %v415, 16
  %v419 = vshrl.u32 %v415, 16
  %v420 = vshll.u32 %v416, 16
  %v421 = vshrl.u32 %v416, 16
  %vm422 = vc.u32 %v414, %v418
  %v423 = vsel %vm422, 1, 0
  %v424 = vadd.s32 %v414, %v418
  %v425 = vadd.s32 %v417, %v423
  %vm426 = vc.u32 %v424, %v420
  %v427 = vsel %vm426, 1, 0
  %v428 = vadd.s32 %v424, %v420
  %v429 = vadd.s32 %v425, %v427
  %v430 = vadd.s32 %v429, %v419
  %v431 = vadd.s32 %v430, %v421
  %v432 = vand.u32 %v409, 65535
  %v433 = vshrl.u32 %v409, 16
  %v434 = vand.u32 %v404, 65535
  %v435 = vshrl.u32 %v404, 16
  %v436 = vmul.u32 %v432, %v434
  %v437 = vmul.u32 %v432, %v435
  %v438 = vmul.u32 %v433, %v434
  %v439 = vmul.u32 %v433, %v435
  %v440 = vshll.u32 %v437, 16
  %v441 = vshrl.u32 %v437, 16
  %v442 = vshll.u32 %v438, 16
  %v443 = vshrl.u32 %v438, 16
  %vm444 = vc.u32 %v436, %v440
  %v445 = vsel %vm444, 1, 0
  %v446 = vadd.s32 %v436, %v440
  %v447 = vadd.s32 %v439, %v445
  %vm448 = vc.u32 %v446, %v442
  %v449 = vsel %vm448, 1, 0
  %v450 = vadd.s32 %v446, %v442
  %v451 = vadd.s32 %v447, %v449
  %v452 = vadd.s32 %v451, %v441
  %v453 = vadd.s32 %v452, %v443
  %v454 = vmul.u32 %v409, %v400
  %v455 = vadd.s32 %v431, %v450
  %vm456 = vc.u32 %v431, %v450
  %v457 = vadd.s32 %v453, 1
  %v458 = vsel %vm456, %v457, %v453
  %v459 = vadd.s32 %v454, %v458
  %v460 = vadd.s32 %v459, 536870912
  %v461 = vshrl.u32 %v460, 30
  %v462 = vshll.u32 %v461, 30
  %v463 = vsub.s32 %v459, %v462
  %vm464 = vcmp.lt.s32.totalorder %v463, 0
  %v465 = vsub.s32 0, %v463
  %v466 = vsel %vm464, %v465, %v463
  %v467 = vclz %v466
  %v468 = vsub.s32 %v467, 2
  %vm469 = vcmp.gt.s32.totalorder 0, %v468
  %v470 = vsel %vm469, 0, %v468
  %v471 = vsub.s32 32, %v470
  %v472 = vshll.u32 %v463, %v470
  %v473 = vshrl.u32 %v455, %v471
  %v474 = vor.u32 %v472, %v473
  %v475 = vsub.s32 4294967266, %v470
  %v476 = vadd.s32 %v475, 127
  %v477 = vshll.u32 %v476, 23
  %v478 = vor.u32 4788187, %v477
  %v479 = vand.u32 2147483647, %v478
  %v481 = vcvt.s32.f32 %v474
  %v482 = vmul.f32 %v481, %v479
  %v483 = vxor.u32 %v482, 2147483648
  %v484 = vsel %vm363, %v483, %v482
  %v485 = vsub.s32 4, %v461
  %v486 = vsel %vm363, %v485, %v461
  %v487 = vsel %vm362, %v49, %v484
  %v488 = vsel %vm362, 0, %v486
  %v489 = vmul.f32 %v487, %v487
  %v490 = vmul.f32 %v489, -0.001358992
  %v491 = vadd.f32 %v490, 0.041655596
  %v492 = vmul.f32 %v489, %v491
  %v493 = vadd.f32 %v492, -0.4999988
  %v494 = vmul.f32 %v489, %v493
  %v495 = vadd.f32 1.0, %v494
  %v496 = vmul.f32 %v487, %v487
  %v497 = vmul.f32 %v496, -0.00019511016
  %v498 = vadd.f32 %v497, 0.008332121
  %v499 = vmul.f32 %v496, %v498
  %v500 = vadd.f32 %v499, -0.16666654
  %v501 = vmul.f32 %v496, %v500
  %v502 = vadd.f32 %v501, 1.0
  %v503 = vmul.f32 %v502, %v487
  %vm504 = vweird.f32 %v49
  %v505 = vadd.s32 %v488, 3
  %v506 = vand.u32 %v505, 3
  %vm507 = vcmp.lt.s32.totalorder %v506, 2
  %vm508 = vcmp.eq.s32.totalorder %v506, 0
  %v509 = vxor.u32 %v503, 2147483648
  %v510 = vsel %vm508, %v495, %v509
  %vm511 = vcmp.eq.s32.totalorder %v506, 2
  %v512 = vxor.u32 %v495, 2147483648
  %v513 = vsel %vm511, %v512, %v503
  %v514 = vsel %vm507, %v510, %v513
  %v515 = vsel %vm504, nan, %v514
  %v516 = vand.u32 2147483647, %v50
  %vm517 = vcmp.le.f32.partialorder %v516, 0.7853982
  %vm518 = vcmp.lt.s32.totalorder %v50, 0
  %v519 = vand.u32 %v50, 2139095040
  %v520 = vshrl.u32 %v519, 23
  %v521 = vsub.s32 %v520, 127
  %v522 = vand.u32 2147483647, %v50
  %v523 = vand.u32 %v522, 8388607
  %v524 = vor.u32 %v523, 8388608
  %v525 = vsub.s32 0, %v524
  %v526 = vadd.s32 %v521, 1
  %vm527 = vcmp.gt.s32.totalorder %v526, 0
  %v528 = vsel %vm527, %v526, 0
  %v529 = vshrl.u32 %v528, 5
  %v530 = vand.u32 %v528, 31
  %v531 = vsub.s32 32, %v530
  %v532 = vshrl.u32 683565275, %v531
  %v533 = vshll.u32 683565275, %v530
  %v534 = vshrl.u32 2475754826, %v531
  %v535 = vor.u32 %v533, %v534
  %v536 = vshll.u32 2475754826, %v530
  %v537 = vshrl.u32 2131351028, %v531
  %v538 = vor.u32 %v536, %v537
  %v539 = vshll.u32 2131351028, %v530
  %v540 = vshrl.u32 2102212464, %v531
  %v541 = vor.u32 %v539, %v540
  %v542 = vshll.u32 2102212464, %v530
  %v543 = vshrl.u32 920167782, %v531
  %v544 = vor.u32 %v542, %v543
  %v545 = vshll.u32 920167782, %v530
  %v546 = vshrl.u32 1326507024, %v531
  %v547 = vor.u32 %v545, %v546
  %vm548 = vcmp.lt.s32.totalorder %v529, 1
  %vm549 = vcmp.lt.s32.totalorder %v529, 2
  %vm550 = vcmp.lt.s32.totalorder %v529, 3
  %vm551 = vcmp.lt.s32.totalorder %v529, 4
  %v552 = vsel %vm548, %v532, %v535
  %v553 = vsel %vm551, %v541, 2102212464
  %v554 = vsel %vm550, %v538, %v553
  %v555 = vsel %vm549, %v552, %v554
  %v556 = vsel %vm548, %v535, %v538
  %v557 = vsel %vm551, %v544, 920167782
  %v558 = vsel %vm550, %v541, %v557
  %v559 = vsel %vm549, %v556, %v558
  %v560 = vsel %vm548, %v538, %v541
  %v561 = vsel %vm551, %v547, 1326507024
  %v562 = vsel %vm550, %v544, %v561
  %v563 = vsel %vm549, %v560, %v562
  %v564 = vshll.u32 %v524, 8
  %v565 = vand.u32 %v564, 65535
  %v566 = vshrl.u32 %v564, 16
  %v567 = vand.u32 %v563, 65535
  %v568 = vshrl.u32 %v563, 16
  %v569 = vmul.u32 %v565, %v567
  %v570 = vmul.u32 %v565, %v568
  %v571 = vmul.u32 %v566, %v567
  %v572 = vmul.u32 %v566, %v568
  %v573 = vshll.u32 %v570, 16
  %v574 = vshrl.u32 %v570, 16
  %v575 = vshll.u32 %v571, 16
  %v576 = vshrl.u32 %v571, 16
  %vm577 = vc.u32 %v569, %v573
  %v578 = vsel %vm577, 1, 0
  %v579 = vadd.s32 %v569, %v573
  %v580 = vadd.s32 %v572, %v578
  %vm581 = vc.u32 %v579, %v575
  %v582 = vsel %vm581, 1, 0
  %v583 = vadd.s32 %v579, %v575
  %v584 = vadd.s32 %v580, %v582
  %v585 = vadd.s32 %v584, %v574
  %v586 = vadd.s32 %v585, %v576
  %v587 = vand.u32 %v564, 65535
  %v588 = vshrl.u32 %v564, 16
  %v589 = vand.u32 %v559, 65535
  %v590 = vshrl.u32 %v559, 16
  %v591 = vmul.u32 %v587, %v589
  %v592 = vmul.u32 %v587, %v590
  %v593 = vmul.u32 %v588, %v589
  %v594 = vmul.u32 %v588, %v590
  %v595 = vshll.u32 %v592, 16
  %v596 = vshrl.u32 %v592, 16
  %v597 = vshll.u32 %v593, 16
  %v598 = vshrl.u32 %v593, 16
  %vm599 = vc.u32 %v591, %v595
  %v600 = vsel %vm599, 1, 0
  %v601 = vadd.s32 %v591, %v595
  %v602 = vadd.s32 %v594, %v600
  %vm603 = vc.u32 %v601, %v597
  %v604 = vsel %vm603, 1, 0
  %v605 = vadd.s32 %v601, %v597
  %v606 = vadd.s32 %v602, %v604
  %v607 = vadd.s32 %v606, %v596
  %v608 = vadd.s32 %v607, %v598
  %v609 = vmul.u32 %v564, %v555
  %v610 = vadd.s32 %v586, %v605
  %vm611 = vc.u32 %v586, %v605
  %v612 = vadd.s32 %v608, 1
  %v613 = vsel %vm611, %v612, %v608
  %v614 = vadd.s32 %v609, %v613
  %v615 = vadd.s32 %v614, 536870912
  %v616 = vshrl.u32 %v615, 30
  %v617 = vshll.u32 %v616, 30
  %v618 = vsub.s32 %v614, %v617
  %vm619 = vcmp.lt.s32.totalorder %v618, 0
  %v620 = vsub.s32 0, %v618
  %v621 = vsel %vm619, %v620, %v618
  %v622 = vclz %v621
  %v623 = vsub.s32 %v622, 2
  %vm624 = vcmp.gt.s32.totalorder 0, %v623
  %v625 = vsel %vm624, 0, %v623
  %v626 = vsub.s32 32, %v625
  %v627 = vshll.u32 %v618, %v625
  %v628 = vshrl.u32 %v610, %v626
  %v629 = vor.u32 %v627, %v628
  %v630 = vsub.s32 4294967266, %v625
  %v631 = vadd.s32 %v630, 127
  %v632 = vshll.u32 %v631, 23
  %v633 = vor.u32 4788187, %v632
  %v634 = vand.u32 2147483647, %v633
  %v636 = vcvt.s32.f32 %v629
  %v637 = vmul.f32 %v636, %v634
  %v638 = vxor.u32 %v637, 2147483648
  %v639 = vsel %vm518, %v638, %v637
  %v640 = vsub.s32 4, %v616
  %v641 = vsel %vm518, %v640, %v616
  %v642 = vsel %vm517, %v50, %v639
  %v643 = vsel %vm517, 0, %v641
  %v644 = vmul.f32 %v642, %v642
  %v645 = vmul.f32 %v644, -0.001358992
  %v646 = vadd.f32 %v645, 0.041655596
  %v647 = vmul.f32 %v644, %v646
  %v648 = vadd.f32 %v647, -0.4999988
  %v649 = vmul.f32 %v644, %v648
  %v650 = vadd.f32 1.0, %v649
  %v651 = vmul.f32 %v642, %v642
  %v652 = vmul.f32 %v651, -0.00019511016
  %v653 = vadd.f32 %v652, 0.008332121
  %v654 = vmul.f32 %v651, %v653
  %v655 = vadd.f32 %v654, -0.16666654
  %v656 = vmul.f32 %v651, %v655
  %v657 = vadd.f32 %v656, 1.0
  %v658 = vmul.f32 %v657, %v642
  %vm659 = vweird.f32 %v50
  %v660 = vadd.s32 %v643, 3
  %v661 = vand.u32 %v660, 3
  %vm662 = vcmp.lt.s32.totalorder %v661, 2
  %vm663 = vcmp.eq.s32.totalorder %v661, 0
  %v664 = vxor.u32 %v658, 2147483648
  %v665 = vsel %vm663, %v650, %v664
  %vm666 = vcmp.eq.s32.totalorder %v661, 2
  %v667 = vxor.u32 %v650, 2147483648
  %v668 = vsel %vm666, %v667, %v658
  %v669 = vsel %vm662, %v665, %v668
  %v670 = vsel %vm659, nan, %v669
  %vm671 = vcmp.le.f32.partialorder %v18, 2.5e-09
  %v672 = vsel %vm671, 1, 0
  %v673 = vperm.slane %v672, 0
  %v674 = vperm.slane %v672, 1
  %v675 = vperm.slane %v672, 2
  %v676 = vperm.slane %v672, 3
  %vm677 = vcmp.eq.s32.totalorder %v673, 1
  %vm678 = vcmp.eq.s32.totalorder %v674, 1
  %vm679 = vcmp.eq.s32.totalorder %v675, 1
  %vm680 = vcmp.eq.s32.totalorder %v676, 1
  %v681 = vsel %vm677, %v205, 0.0
  %v682 = vsel %vm678, %v360, 0.0
  %v683 = vsel %vm679, %v515, 0.0
  %v684 = vsel %vm680, %v670, 0.0
  %vm685 = vcmp.gt.f32.partialorder %v19, 0.0
  %v686 = vld [vmem:[%s3] sm:$0xff]
  %v687 = vld [vmem:[%s3 + $0x8] sm:$0xff]
  %v688 = vld [vmem:[%s3 + $0x10] sm:$0xff]
  %v689 = vld [vmem:[%s3 + $0x18] sm:$0xff]
  %690 = vrot.lane.b32.xlu0 %v681, 1
  %v691 = vpop.permute.xlu0 %690
  %692 = vrot.lane.b32.xlu0 %v682, 1
  %v693 = vpop.permute.xlu0 %692
  %694 = vrot.lane.b32.xlu0 %v683, 1
  %v695 = vpop.permute.xlu0 %694
  %696 = vrot.lane.b32.xlu0 %v684, 1
  %v697 = vpop.permute.xlu0 %696
  %v698 = vlaneseq
  %v699 = vand.u32 %v698, 127
  %vm700 = vcmp.lt.s32.totalorder %v699, 1
  %v701 = vsel %vm700, %v695, %v697
  %v702 = vsel %vm700, %v693, %v695
  %v703 = vsel %vm700, %v691, %v693
  %v704 = vsel %vm700, %v697, %v691
  %v705 = vsel %vm685, 1, 0
  %v706 = vperm.slane %v705, 0
  %v707 = vperm.slane %v705, 1
  %v708 = vperm.slane %v705, 2
  %v709 = vperm.slane %v705, 3
  %vm710 = vcmp.eq.s32.totalorder %v706, 1
  %vm711 = vcmp.eq.s32.totalorder %v707, 1
  %vm712 = vcmp.eq.s32.totalorder %v708, 1
  %vm713 = vcmp.eq.s32.totalorder %v709, 1
  %v714 = vsel %vm710, %v681, %v704
  %v715 = vsel %vm711, %v682, %v703
  %v716 = vsel %vm712, %v683, %v702
  %v717 = vsel %vm713, %v684, %v701
  %718 = vrot.lane.b32.xlu0 %v681, 127
  %v719 = vpop.permute.xlu0 %718
  %720 = vrot.lane.b32.xlu0 %v682, 127
  %v721 = vpop.permute.xlu0 %720
  %722 = vrot.lane.b32.xlu0 %v683, 127
  %v723 = vpop.permute.xlu0 %722
  %724 = vrot.lane.b32.xlu0 %v684, 127
  %v725 = vpop.permute.xlu0 %724
  %vm726 = vcmp.lt.s32.totalorder %v699, 127
  %v727 = vsel %vm726, %v723, %v725
  %v728 = vsel %vm726, %v721, %v723
  %v729 = vsel %vm726, %v719, %v721
  %v730 = vsel %vm726, %v725, %v719
  %v731 = vsub.f32 0.0, %v729
  %v732 = vsub.f32 0.0, %v728
  %v733 = vsub.f32 0.0, %v727
  %v734 = vsub.f32 0.0, %v730
  %v735 = vsel %vm710, %v731, %v681
  %v736 = vsel %vm711, %v732, %v682
  %v737 = vsel %vm712, %v733, %v683
  %v738 = vsel %vm713, %v734, %v684
  %739 = vrot.lane.b32.xlu0 %v686, 127
  %v740 = vpop.permute.xlu0 %739
  %741 = vrot.lane.b32.xlu0 %v687, 127
  %v742 = vpop.permute.xlu0 %741
  %743 = vrot.lane.b32.xlu0 %v688, 127
  %v744 = vpop.permute.xlu0 %743
  %745 = vrot.lane.b32.xlu0 %v689, 127
  %v746 = vpop.permute.xlu0 %745
  %v747 = vsel %vm726, %v744, %v746
  %v748 = vsel %vm726, %v742, %v744
  %v749 = vsel %vm726, %v740, %v742
  %v750 = vsel %vm726, %v746, %v740
  %751 = vrot.lane.b32.xlu0 %v686, 1
  %v752 = vpop.permute.xlu0 %751
  %753 = vrot.lane.b32.xlu0 %v687, 1
  %v754 = vpop.permute.xlu0 %753
  %755 = vrot.lane.b32.xlu0 %v688, 1
  %v756 = vpop.permute.xlu0 %755
  %757 = vrot.lane.b32.xlu0 %v689, 1
  %v758 = vpop.permute.xlu0 %757
  %v759 = vsel %vm700, %v756, %v758
  %v760 = vsel %vm700, %v754, %v756
  %v761 = vsel %vm700, %v752, %v754
  %v762 = vsel %vm700, %v758, %v752
  %v763 = vsel %vm710, %v749, %v762
  %v764 = vsel %vm711, %v748, %v761
  %v765 = vsel %vm712, %v747, %v760
  %v766 = vsel %vm713, %v750, %v759
  %v767 = vmul.f32 %v686, %v714
  %v768 = vmul.f32 %v687, %v715
  %v769 = vmul.f32 %v688, %v716
  %v770 = vmul.f32 %v689, %v717
  %v771 = vmul.f32 %v763, %v735
  %v772 = vmul.f32 %v764, %v736
  %v773 = vmul.f32 %v765, %v737
  %v774 = vmul.f32 %v766, %v738
  %v775 = vadd.f32 %v767, %v771
  %v776 = vadd.f32 %v768, %v772
  %v777 = vadd.f32 %v769, %v773
  %v778 = vadd.f32 %v770, %v774
  %779 = vst [vmem:[%s4] sm:$0xff] %v775
  %780 = vst [vmem:[%s4 + $0x8] sm:$0xff] %v776
  %781 = vst [vmem:[%s4 + $0x10] sm:$0xff] %v777
  %782 = vst [vmem:[%s4 + $0x18] sm:$0xff] %v778
  // Predicated region
  $region18: #{focusing_error_phase_mask.1} parent=0 // pred_check
    _
  $region19: #{focusing_error_phase_mask.1} parent=0 // pred_check_branch
    %784 = sbr.rel (0) target = $region21
  $region20: #{focusing_error_phase_mask.1} parent=0 // pred_region
    _
  $region21: #{focusing_error_phase_mask.1} parent=0 // pred_fallthru
    _
  // Predicated region
  $region22: #{focusing_error_phase_mask.1} parent=0 // pred_check
    _
  $region23: #{focusing_error_phase_mask.1} parent=0 // pred_check_branch
    %786 = sbr.rel (0) target = $region25
  $region24: #{focusing_error_phase_mask.1} parent=0 // pred_region
    _
  $region25: #{focusing_error_phase_mask.1} parent=0 // pred_fallthru
    _

// kernel: custom-call.2
$region0: #{custom-call.2}
  %s0 = inlined_call_operand.vmem [shape: f32[2,4,16,16], index: 0, kind: input, shape index: {}]
  %s1 = inlined_call_operand.vmem [shape: f32[2,4,16,16], index: 1, kind: input, shape index: {}]
  %s2 = inlined_call_operand.vmem [shape: c64[2,4,16,16], index: 2, kind: output, shape index: {}]
  %s3 = scalar_lea.vmem %s2, 512
  %v4 = vld [vmem:[%s0] sm:$0xff]
  %5 = vst [vmem:[%s2] sm:$0xff] %v4
  %s6 = scalar_lea.vmem %s2, 8
  %s7 = scalar_lea.vmem %s0, 8
  %v8 = vld [vmem:[%s7] sm:$0xff]
  %9 = vst [vmem:[%s6] sm:$0xff] %v8
  %s10 = scalar_lea.vmem %s2, 16
  %s11 = scalar_lea.vmem %s0, 16
  %v12 = vld [vmem:[%s11] sm:$0xff]
  %13 = vst [vmem:[%s10] sm:$0xff] %v12
  %s14 = scalar_lea.vmem %s2, 24
  %s15 = scalar_lea.vmem %s0, 24
  %v16 = vld [vmem:[%s15] sm:$0xff]
  %17 = vst [vmem:[%s14] sm:$0xff] %v16
  %s18 = scalar_lea.vmem %s2, 32
  %s19 = scalar_lea.vmem %s0, 32
  %v20 = vld [vmem:[%s19] sm:$0xff]
  %21 = vst [vmem:[%s18] sm:$0xff] %v20
  %s22 = scalar_lea.vmem %s2, 40
  %s23 = scalar_lea.vmem %s0, 40
  %v24 = vld [vmem:[%s23] sm:$0xff]
  %25 = vst [vmem:[%s22] sm:$0xff] %v24
  %s26 = scalar_lea.vmem %s2, 48
  %s27 = scalar_lea.vmem %s0, 48
  %v28 = vld [vmem:[%s27] sm:$0xff]
  %29 = vst [vmem:[%s26] sm:$0xff] %v28
  %s30 = scalar_lea.vmem %s2, 56
  %s31 = scalar_lea.vmem %s0, 56
  %v32 = vld [vmem:[%s31] sm:$0xff]
  %33 = vst [vmem:[%s30] sm:$0xff] %v32
  %s34 = scalar_lea.vmem %s2, 64
  %s35 = scalar_lea.vmem %s0, 64
  %v36 = vld [vmem:[%s35] sm:$0xff]
  %37 = vst [vmem:[%s34] sm:$0xff] %v36
  %s38 = scalar_lea.vmem %s2, 72
  %s39 = scalar_lea.vmem %s0, 72
  %v40 = vld [vmem:[%s39] sm:$0xff]
  %41 = vst [vmem:[%s38] sm:$0xff] %v40
  %s42 = scalar_lea.vmem %s2, 80
  %s43 = scalar_lea.vmem %s0, 80
  %v44 = vld [vmem:[%s43] sm:$0xff]
  %45 = vst [vmem:[%s42] sm:$0xff] %v44
  %s46 = scalar_lea.vmem %s2, 88
  %s47 = scalar_lea.vmem %s0, 88
  %v48 = vld [vmem:[%s47] sm:$0xff]
  %49 = vst [vmem:[%s46] sm:$0xff] %v48
  %s50 = scalar_lea.vmem %s2, 96
  %s51 = scalar_lea.vmem %s0, 96
  %v52 = vld [vmem:[%s51] sm:$0xff]
  %53 = vst [vmem:[%s50] sm:$0xff] %v52
  %s54 = scalar_lea.vmem %s2, 104
  %s55 = scalar_lea.vmem %s0, 104
  %v56 = vld [vmem:[%s55] sm:$0xff]
  %57 = vst [vmem:[%s54] sm:$0xff] %v56
  %s58 = scalar_lea.vmem %s2, 112
  %s59 = scalar_lea.vmem %s0, 112
  %v60 = vld [vmem:[%s59] sm:$0xff]
  %61 = vst [vmem:[%s58] sm:$0xff] %v60
  %s62 = scalar_lea.vmem %s2, 120
  %s63 = scalar_lea.vmem %s0, 120
  %v64 = vld [vmem:[%s63] sm:$0xff]
  %65 = vst [vmem:[%s62] sm:$0xff] %v64
  %s66 = scalar_lea.vmem %s2, 128
  %s67 = scalar_lea.vmem %s0, 128
  %v68 = vld [vmem:[%s67] sm:$0xff]
  %69 = vst [vmem:[%s66] sm:$0xff] %v68
  %s70 = scalar_lea.vmem %s2, 136
  %s71 = scalar_lea.vmem %s0, 136
  %v72 = vld [vmem:[%s71] sm:$0xff]
  %73 = vst [vmem:[%s70] sm:$0xff] %v72
  %s74 = scalar_lea.vmem %s2, 144
  %s75 = scalar_lea.vmem %s0, 144
  %v76 = vld [vmem:[%s75] sm:$0xff]
  %77 = vst [vmem:[%s74] sm:$0xff] %v76
  %s78 = scalar_lea.vmem %s2, 152
  %s79 = scalar_lea.vmem %s0, 152
  %v80 = vld [vmem:[%s79] sm:$0xff]
  %81 = vst [vmem:[%s78] sm:$0xff] %v80
  %s82 = scalar_lea.vmem %s2, 160
  %s83 = scalar_lea.vmem %s0, 160
  %v84 = vld [vmem:[%s83] sm:$0xff]
  %85 = vst [vmem:[%s82] sm:$0xff] %v84
  %s86 = scalar_lea.vmem %s2, 168
  %s87 = scalar_lea.vmem %s0, 168
  %v88 = vld [vmem:[%s87] sm:$0xff]
  %89 = vst [vmem:[%s86] sm:$0xff] %v88
  %s90 = scalar_lea.vmem %s2, 176
  %s91 = scalar_lea.vmem %s0, 176
  %v92 = vld [vmem:[%s91] sm:$0xff]
  %93 = vst [vmem:[%s90] sm:$0xff] %v92
  %s94 = scalar_lea.vmem %s2, 184
  %s95 = scalar_lea.vmem %s0, 184
  %v96 = vld [vmem:[%s95] sm:$0xff]
  %97 = vst [vmem:[%s94] sm:$0xff] %v96
  %s98 = scalar_lea.vmem %s2, 192
  %s99 = scalar_lea.vmem %s0, 192
  %v100 = vld [vmem:[%s99] sm:$0xff]
  %101 = vst [vmem:[%s98] sm:$0xff] %v100
  %s102 = scalar_lea.vmem %s2, 200
  %s103 = scalar_lea.vmem %s0, 200
  %v104 = vld [vmem:[%s103] sm:$0xff]
  %105 = vst [vmem:[%s102] sm:$0xff] %v104
  %s106 = scalar_lea.vmem %s2, 208
  %s107 = scalar_lea.vmem %s0, 208
  %v108 = vld [vmem:[%s107] sm:$0xff]
  %109 = vst [vmem:[%s106] sm:$0xff] %v108
  %s110 = scalar_lea.vmem %s2, 216
  %s111 = scalar_lea.vmem %s0, 216
  %v112 = vld [vmem:[%s111] sm:$0xff]
  %113 = vst [vmem:[%s110] sm:$0xff] %v112
  %s114 = scalar_lea.vmem %s2, 224
  %s115 = scalar_lea.vmem %s0, 224
  %v116 = vld [vmem:[%s115] sm:$0xff]
  %117 = vst [vmem:[%s114] sm:$0xff] %v116
  %s118 = scalar_lea.vmem %s2, 232
  %s119 = scalar_lea.vmem %s0, 232
  %v120 = vld [vmem:[%s119] sm:$0xff]
  %121 = vst [vmem:[%s118] sm:$0xff] %v120
  %s122 = scalar_lea.vmem %s2, 240
  %s123 = scalar_lea.vmem %s0, 240
  %v124 = vld [vmem:[%s123] sm:$0xff]
  %125 = vst [vmem:[%s122] sm:$0xff] %v124
  %s126 = scalar_lea.vmem %s2, 248
  %s127 = scalar_lea.vmem %s0, 248
  %v128 = vld [vmem:[%s127] sm:$0xff]
  %129 = vst [vmem:[%s126] sm:$0xff] %v128
  %s130 = scalar_lea.vmem %s2, 256
  %s131 = scalar_lea.vmem %s0, 256
  %v132 = vld [vmem:[%s131] sm:$0xff]
  %133 = vst [vmem:[%s130] sm:$0xff] %v132
  %s134 = scalar_lea.vmem %s2, 264
  %s135 = scalar_lea.vmem %s0, 264
  %v136 = vld [vmem:[%s135] sm:$0xff]
  %137 = vst [vmem:[%s134] sm:$0xff] %v136
  %s138 = scalar_lea.vmem %s2, 272
  %s139 = scalar_lea.vmem %s0, 272
  %v140 = vld [vmem:[%s139] sm:$0xff]
  %141 = vst [vmem:[%s138] sm:$0xff] %v140
  %s142 = scalar_lea.vmem %s2, 280
  %s143 = scalar_lea.vmem %s0, 280
  %v144 = vld [vmem:[%s143] sm:$0xff]
  %145 = vst [vmem:[%s142] sm:$0xff] %v144
  %s146 = scalar_lea.vmem %s2, 288
  %s147 = scalar_lea.vmem %s0, 288
  %v148 = vld [vmem:[%s147] sm:$0xff]
  %149 = vst [vmem:[%s146] sm:$0xff] %v148
  %s150 = scalar_lea.vmem %s2, 296
  %s151 = scalar_lea.vmem %s0, 296
  %v152 = vld [vmem:[%s151] sm:$0xff]
  %153 = vst [vmem:[%s150] sm:$0xff] %v152
  %s154 = scalar_lea.vmem %s2, 304
  %s155 = scalar_lea.vmem %s0, 304
  %v156 = vld [vmem:[%s155] sm:$0xff]
  %157 = vst [vmem:[%s154] sm:$0xff] %v156
  %s158 = scalar_lea.vmem %s2, 312
  %s159 = scalar_lea.vmem %s0, 312
  %v160 = vld [vmem:[%s159] sm:$0xff]
  %161 = vst [vmem:[%s158] sm:$0xff] %v160
  %s162 = scalar_lea.vmem %s2, 320
  %s163 = scalar_lea.vmem %s0, 320
  %v164 = vld [vmem:[%s163] sm:$0xff]
  %165 = vst [vmem:[%s162] sm:$0xff] %v164
  %s166 = scalar_lea.vmem %s2, 328
  %s167 = scalar_lea.vmem %s0, 328
  %v168 = vld [vmem:[%s167] sm:$0xff]
  %169 = vst [vmem:[%s166] sm:$0xff] %v168
  %s170 = scalar_lea.vmem %s2, 336
  %s171 = scalar_lea.vmem %s0, 336
  %v172 = vld [vmem:[%s171] sm:$0xff]
  %173 = vst [vmem:[%s170] sm:$0xff] %v172
  %s174 = scalar_lea.vmem %s2, 344
  %s175 = scalar_lea.vmem %s0, 344
  %v176 = vld [vmem:[%s175] sm:$0xff]
  %177 = vst [vmem:[%s174] sm:$0xff] %v176
  %s178 = scalar_lea.vmem %s2, 352
  %s179 = scalar_lea.vmem %s0, 352
  %v180 = vld [vmem:[%s179] sm:$0xff]
  %181 = vst [vmem:[%s178] sm:$0xff] %v180
  %s182 = scalar_lea.vmem %s2, 360
  %s183 = scalar_lea.vmem %s0, 360
  %v184 = vld [vmem:[%s183] sm:$0xff]
  %185 = vst [vmem:[%s182] sm:$0xff] %v184
  %s186 = scalar_lea.vmem %s2, 368
  %s187 = scalar_lea.vmem %s0, 368
  %v188 = vld [vmem:[%s187] sm:$0xff]
  %189 = vst [vmem:[%s186] sm:$0xff] %v188
  %s190 = scalar_lea.vmem %s2, 376
  %s191 = scalar_lea.vmem %s0, 376
  %v192 = vld [vmem:[%s191] sm:$0xff]
  %193 = vst [vmem:[%s190] sm:$0xff] %v192
  %s194 = scalar_lea.vmem %s2, 384
  %s195 = scalar_lea.vmem %s0, 384
  %v196 = vld [vmem:[%s195] sm:$0xff]
  %197 = vst [vmem:[%s194] sm:$0xff] %v196
  %s198 = scalar_lea.vmem %s2, 392
  %s199 = scalar_lea.vmem %s0, 392
  %v200 = vld [vmem:[%s199] sm:$0xff]
  %201 = vst [vmem:[%s198] sm:$0xff] %v200
  %s202 = scalar_lea.vmem %s2, 400
  %s203 = scalar_lea.vmem %s0, 400
  %v204 = vld [vmem:[%s203] sm:$0xff]
  %205 = vst [vmem:[%s202] sm:$0xff] %v204
  %s206 = scalar_lea.vmem %s2, 408
  %s207 = scalar_lea.vmem %s0, 408
  %v208 = vld [vmem:[%s207] sm:$0xff]
  %209 = vst [vmem:[%s206] sm:$0xff] %v208
  %s210 = scalar_lea.vmem %s2, 416
  %s211 = scalar_lea.vmem %s0, 416
  %v212 = vld [vmem:[%s211] sm:$0xff]
  %213 = vst [vmem:[%s210] sm:$0xff] %v212
  %s214 = scalar_lea.vmem %s2, 424
  %s215 = scalar_lea.vmem %s0, 424
  %v216 = vld [vmem:[%s215] sm:$0xff]
  %217 = vst [vmem:[%s214] sm:$0xff] %v216
  %s218 = scalar_lea.vmem %s2, 432
  %s219 = scalar_lea.vmem %s0, 432
  %v220 = vld [vmem:[%s219] sm:$0xff]
  %221 = vst [vmem:[%s218] sm:$0xff] %v220
  %s222 = scalar_lea.vmem %s2, 440
  %s223 = scalar_lea.vmem %s0, 440
  %v224 = vld [vmem:[%s223] sm:$0xff]
  %225 = vst [vmem:[%s222] sm:$0xff] %v224
  %s226 = scalar_lea.vmem %s2, 448
  %s227 = scalar_lea.vmem %s0, 448
  %v228 = vld [vmem:[%s227] sm:$0xff]
  %229 = vst [vmem:[%s226] sm:$0xff] %v228
  %s230 = scalar_lea.vmem %s2, 456
  %s231 = scalar_lea.vmem %s0, 456
  %v232 = vld [vmem:[%s231] sm:$0xff]
  %233 = vst [vmem:[%s230] sm:$0xff] %v232
  %s234 = scalar_lea.vmem %s2, 464
  %s235 = scalar_lea.vmem %s0, 464
  %v236 = vld [vmem:[%s235] sm:$0xff]
  %237 = vst [vmem:[%s234] sm:$0xff] %v236
  %s238 = scalar_lea.vmem %s2, 472
  %s239 = scalar_lea.vmem %s0, 472
  %v240 = vld [vmem:[%s239] sm:$0xff]
  %241 = vst [vmem:[%s238] sm:$0xff] %v240
  %s242 = scalar_lea.vmem %s2, 480
  %s243 = scalar_lea.vmem %s0, 480
  %v244 = vld [vmem:[%s243] sm:$0xff]
  %245 = vst [vmem:[%s242] sm:$0xff] %v244
  %s246 = scalar_lea.vmem %s2, 488
  %s247 = scalar_lea.vmem %s0, 488
  %v248 = vld [vmem:[%s247] sm:$0xff]
  %249 = vst [vmem:[%s246] sm:$0xff] %v248
  %s250 = scalar_lea.vmem %s2, 496
  %s251 = scalar_lea.vmem %s0, 496
  %v252 = vld [vmem:[%s251] sm:$0xff]
  %253 = vst [vmem:[%s250] sm:$0xff] %v252
  %s254 = scalar_lea.vmem %s2, 504
  %s255 = scalar_lea.vmem %s0, 504
  %v256 = vld [vmem:[%s255] sm:$0xff]
  %257 = vst [vmem:[%s254] sm:$0xff] %v256
  %v258 = vld [vmem:[%s1] sm:$0xff]
  %259 = vst [vmem:[%s3] sm:$0xff] %v258
  %s260 = scalar_lea.vmem %s3, 8
  %s261 = scalar_lea.vmem %s1, 8
  %v262 = vld [vmem:[%s261] sm:$0xff]
  %263 = vst [vmem:[%s260] sm:$0xff] %v262
  %s264 = scalar_lea.vmem %s3, 16
  %s265 = scalar_lea.vmem %s1, 16
  %v266 = vld [vmem:[%s265] sm:$0xff]
  %267 = vst [vmem:[%s264] sm:$0xff] %v266
  %s268 = scalar_lea.vmem %s3, 24
  %s269 = scalar_lea.vmem %s1, 24
  %v270 = vld [vmem:[%s269] sm:$0xff]
  %271 = vst [vmem:[%s268] sm:$0xff] %v270
  %s272 = scalar_lea.vmem %s3, 32
  %s273 = scalar_lea.vmem %s1, 32
  %v274 = vld [vmem:[%s273] sm:$0xff]
  %275 = vst [vmem:[%s272] sm:$0xff] %v274
  %s276 = scalar_lea.vmem %s3, 40
  %s277 = scalar_lea.vmem %s1, 40
  %v278 = vld [vmem:[%s277] sm:$0xff]
  %279 = vst [vmem:[%s276] sm:$0xff] %v278
  %s280 = scalar_lea.vmem %s3, 48
  %s281 = scalar_lea.vmem %s1, 48
  %v282 = vld [vmem:[%s281] sm:$0xff]
  %283 = vst [vmem:[%s280] sm:$0xff] %v282
  %s284 = scalar_lea.vmem %s3, 56
  %s285 = scalar_lea.vmem %s1, 56
  %v286 = vld [vmem:[%s285] sm:$0xff]
  %287 = vst [vmem:[%s284] sm:$0xff] %v286
  %s288 = scalar_lea.vmem %s3, 64
  %s289 = scalar_lea.vmem %s1, 64
  %v290 = vld [vmem:[%s289] sm:$0xff]
  %291 = vst [vmem:[%s288] sm:$0xff] %v290
  %s292 = scalar_lea.vmem %s3, 72
  %s293 = scalar_lea.vmem %s1, 72
  %v294 = vld [vmem:[%s293] sm:$0xff]
  %295 = vst [vmem:[%s292] sm:$0xff] %v294
  %s296 = scalar_lea.vmem %s3, 80
  %s297 = scalar_lea.vmem %s1, 80
  %v298 = vld [vmem:[%s297] sm:$0xff]
  %299 = vst [vmem:[%s296] sm:$0xff] %v298
  %s300 = scalar_lea.vmem %s3, 88
  %s301 = scalar_lea.vmem %s1, 88
  %v302 = vld [vmem:[%s301] sm:$0xff]
  %303 = vst [vmem:[%s300] sm:$0xff] %v302
  %s304 = scalar_lea.vmem %s3, 96
  %s305 = scalar_lea.vmem %s1, 96
  %v306 = vld [vmem:[%s305] sm:$0xff]
  %307 = vst [vmem:[%s304] sm:$0xff] %v306
  %s308 = scalar_lea.vmem %s3, 104
  %s309 = scalar_lea.vmem %s1, 104
  %v310 = vld [vmem:[%s309] sm:$0xff]
  %311 = vst [vmem:[%s308] sm:$0xff] %v310
  %s312 = scalar_lea.vmem %s3, 112
  %s313 = scalar_lea.vmem %s1, 112
  %v314 = vld [vmem:[%s313] sm:$0xff]
  %315 = vst [vmem:[%s312] sm:$0xff] %v314
  %s316 = scalar_lea.vmem %s3, 120
  %s317 = scalar_lea.vmem %s1, 120
  %v318 = vld [vmem:[%s317] sm:$0xff]
  %319 = vst [vmem:[%s316] sm:$0xff] %v318
  %s320 = scalar_lea.vmem %s3, 128
  %s321 = scalar_lea.vmem %s1, 128
  %v322 = vld [vmem:[%s321] sm:$0xff]
  %323 = vst [vmem:[%s320] sm:$0xff] %v322
  %s324 = scalar_lea.vmem %s3, 136
  %s325 = scalar_lea.vmem %s1, 136
  %v326 = vld [vmem:[%s325] sm:$0xff]
  %327 = vst [vmem:[%s324] sm:$0xff] %v326
  %s328 = scalar_lea.vmem %s3, 144
  %s329 = scalar_lea.vmem %s1, 144
  %v330 = vld [vmem:[%s329] sm:$0xff]
  %331 = vst [vmem:[%s328] sm:$0xff] %v330
  %s332 = scalar_lea.vmem %s3, 152
  %s333 = scalar_lea.vmem %s1, 152
  %v334 = vld [vmem:[%s333] sm:$0xff]
  %335 = vst [vmem:[%s332] sm:$0xff] %v334
  %s336 = scalar_lea.vmem %s3, 160
  %s337 = scalar_lea.vmem %s1, 160
  %v338 = vld [vmem:[%s337] sm:$0xff]
  %339 = vst [vmem:[%s336] sm:$0xff] %v338
  %s340 = scalar_lea.vmem %s3, 168
  %s341 = scalar_lea.vmem %s1, 168
  %v342 = vld [vmem:[%s341] sm:$0xff]
  %343 = vst [vmem:[%s340] sm:$0xff] %v342
  %s344 = scalar_lea.vmem %s3, 176
  %s345 = scalar_lea.vmem %s1, 176
  %v346 = vld [vmem:[%s345] sm:$0xff]
  %347 = vst [vmem:[%s344] sm:$0xff] %v346
  %s348 = scalar_lea.vmem %s3, 184
  %s349 = scalar_lea.vmem %s1, 184
  %v350 = vld [vmem:[%s349] sm:$0xff]
  %351 = vst [vmem:[%s348] sm:$0xff] %v350
  %s352 = scalar_lea.vmem %s3, 192
  %s353 = scalar_lea.vmem %s1, 192
  %v354 = vld [vmem:[%s353] sm:$0xff]
  %355 = vst [vmem:[%s352] sm:$0xff] %v354
  %s356 = scalar_lea.vmem %s3, 200
  %s357 = scalar_lea.vmem %s1, 200
  %v358 = vld [vmem:[%s357] sm:$0xff]
  %359 = vst [vmem:[%s356] sm:$0xff] %v358
  %s360 = scalar_lea.vmem %s3, 208
  %s361 = scalar_lea.vmem %s1, 208
  %v362 = vld [vmem:[%s361] sm:$0xff]
  %363 = vst [vmem:[%s360] sm:$0xff] %v362
  %s364 = scalar_lea.vmem %s3, 216
  %s365 = scalar_lea.vmem %s1, 216
  %v366 = vld [vmem:[%s365] sm:$0xff]
  %367 = vst [vmem:[%s364] sm:$0xff] %v366
  %s368 = scalar_lea.vmem %s3, 224
  %s369 = scalar_lea.vmem %s1, 224
  %v370 = vld [vmem:[%s369] sm:$0xff]
  %371 = vst [vmem:[%s368] sm:$0xff] %v370
  %s372 = scalar_lea.vmem %s3, 232
  %s373 = scalar_lea.vmem %s1, 232
  %v374 = vld [vmem:[%s373] sm:$0xff]
  %375 = vst [vmem:[%s372] sm:$0xff] %v374
  %s376 = scalar_lea.vmem %s3, 240
  %s377 = scalar_lea.vmem %s1, 240
  %v378 = vld [vmem:[%s377] sm:$0xff]
  %379 = vst [vmem:[%s376] sm:$0xff] %v378
  %s380 = scalar_lea.vmem %s3, 248
  %s381 = scalar_lea.vmem %s1, 248
  %v382 = vld [vmem:[%s381] sm:$0xff]
  %383 = vst [vmem:[%s380] sm:$0xff] %v382
  %s384 = scalar_lea.vmem %s3, 256
  %s385 = scalar_lea.vmem %s1, 256
  %v386 = vld [vmem:[%s385] sm:$0xff]
  %387 = vst [vmem:[%s384] sm:$0xff] %v386
  %s388 = scalar_lea.vmem %s3, 264
  %s389 = scalar_lea.vmem %s1, 264
  %v390 = vld [vmem:[%s389] sm:$0xff]
  %391 = vst [vmem:[%s388] sm:$0xff] %v390
  %s392 = scalar_lea.vmem %s3, 272
  %s393 = scalar_lea.vmem %s1, 272
  %v394 = vld [vmem:[%s393] sm:$0xff]
  %395 = vst [vmem:[%s392] sm:$0xff] %v394
  %s396 = scalar_lea.vmem %s3, 280
  %s397 = scalar_lea.vmem %s1, 280
  %v398 = vld [vmem:[%s397] sm:$0xff]
  %399 = vst [vmem:[%s396] sm:$0xff] %v398
  %s400 = scalar_lea.vmem %s3, 288
  %s401 = scalar_lea.vmem %s1, 288
  %v402 = vld [vmem:[%s401] sm:$0xff]
  %403 = vst [vmem:[%s400] sm:$0xff] %v402
  %s404 = scalar_lea.vmem %s3, 296
  %s405 = scalar_lea.vmem %s1, 296
  %v406 = vld [vmem:[%s405] sm:$0xff]
  %407 = vst [vmem:[%s404] sm:$0xff] %v406
  %s408 = scalar_lea.vmem %s3, 304
  %s409 = scalar_lea.vmem %s1, 304
  %v410 = vld [vmem:[%s409] sm:$0xff]
  %411 = vst [vmem:[%s408] sm:$0xff] %v410
  %s412 = scalar_lea.vmem %s3, 312
  %s413 = scalar_lea.vmem %s1, 312
  %v414 = vld [vmem:[%s413] sm:$0xff]
  %415 = vst [vmem:[%s412] sm:$0xff] %v414
  %s416 = scalar_lea.vmem %s3, 320
  %s417 = scalar_lea.vmem %s1, 320
  %v418 = vld [vmem:[%s417] sm:$0xff]
  %419 = vst [vmem:[%s416] sm:$0xff] %v418
  %s420 = scalar_lea.vmem %s3, 328
  %s421 = scalar_lea.vmem %s1, 328
  %v422 = vld [vmem:[%s421] sm:$0xff]
  %423 = vst [vmem:[%s420] sm:$0xff] %v422
  %s424 = scalar_lea.vmem %s3, 336
  %s425 = scalar_lea.vmem %s1, 336
  %v426 = vld [vmem:[%s425] sm:$0xff]
  %427 = vst [vmem:[%s424] sm:$0xff] %v426
  %s428 = scalar_lea.vmem %s3, 344
  %s429 = scalar_lea.vmem %s1, 344
  %v430 = vld [vmem:[%s429] sm:$0xff]
  %431 = vst [vmem:[%s428] sm:$0xff] %v430
  %s432 = scalar_lea.vmem %s3, 352
  %s433 = scalar_lea.vmem %s1, 352
  %v434 = vld [vmem:[%s433] sm:$0xff]
  %435 = vst [vmem:[%s432] sm:$0xff] %v434
  %s436 = scalar_lea.vmem %s3, 360
  %s437 = scalar_lea.vmem %s1, 360
  %v438 = vld [vmem:[%s437] sm:$0xff]
  %439 = vst [vmem:[%s436] sm:$0xff] %v438
  %s440 = scalar_lea.vmem %s3, 368
  %s441 = scalar_lea.vmem %s1, 368
  %v442 = vld [vmem:[%s441] sm:$0xff]
  %443 = vst [vmem:[%s440] sm:$0xff] %v442
  %s444 = scalar_lea.vmem %s3, 376
  %s445 = scalar_lea.vmem %s1, 376
  %v446 = vld [vmem:[%s445] sm:$0xff]
  %447 = vst [vmem:[%s444] sm:$0xff] %v446
  %s448 = scalar_lea.vmem %s3, 384
  %s449 = scalar_lea.vmem %s1, 384
  %v450 = vld [vmem:[%s449] sm:$0xff]
  %451 = vst [vmem:[%s448] sm:$0xff] %v450
  %s452 = scalar_lea.vmem %s3, 392
  %s453 = scalar_lea.vmem %s1, 392
  %v454 = vld [vmem:[%s453] sm:$0xff]
  %455 = vst [vmem:[%s452] sm:$0xff] %v454
  %s456 = scalar_lea.vmem %s3, 400
  %s457 = scalar_lea.vmem %s1, 400
  %v458 = vld [vmem:[%s457] sm:$0xff]
  %459 = vst [vmem:[%s456] sm:$0xff] %v458
  %s460 = scalar_lea.vmem %s3, 408
  %s461 = scalar_lea.vmem %s1, 408
  %v462 = vld [vmem:[%s461] sm:$0xff]
  %463 = vst [vmem:[%s460] sm:$0xff] %v462
  %s464 = scalar_lea.vmem %s3, 416
  %s465 = scalar_lea.vmem %s1, 416
  %v466 = vld [vmem:[%s465] sm:$0xff]
  %467 = vst [vmem:[%s464] sm:$0xff] %v466
  %s468 = scalar_lea.vmem %s3, 424
  %s469 = scalar_lea.vmem %s1, 424
  %v470 = vld [vmem:[%s469] sm:$0xff]
  %471 = vst [vmem:[%s468] sm:$0xff] %v470
  %s472 = scalar_lea.vmem %s3, 432
  %s473 = scalar_lea.vmem %s1, 432
  %v474 = vld [vmem:[%s473] sm:$0xff]
  %475 = vst [vmem:[%s472] sm:$0xff] %v474
  %s476 = scalar_lea.vmem %s3, 440
  %s477 = scalar_lea.vmem %s1, 440
  %v478 = vld [vmem:[%s477] sm:$0xff]
  %479 = vst [vmem:[%s476] sm:$0xff] %v478
  %s480 = scalar_lea.vmem %s3, 448
  %s481 = scalar_lea.vmem %s1, 448
  %v482 = vld [vmem:[%s481] sm:$0xff]
  %483 = vst [vmem:[%s480] sm:$0xff] %v482
  %s484 = scalar_lea.vmem %s3, 456
  %s485 = scalar_lea.vmem %s1, 456
  %v486 = vld [vmem:[%s485] sm:$0xff]
  %487 = vst [vmem:[%s484] sm:$0xff] %v486
  %s488 = scalar_lea.vmem %s3, 464
  %s489 = scalar_lea.vmem %s1, 464
  %v490 = vld [vmem:[%s489] sm:$0xff]
  %491 = vst [vmem:[%s488] sm:$0xff] %v490
  %s492 = scalar_lea.vmem %s3, 472
  %s493 = scalar_lea.vmem %s1, 472
  %v494 = vld [vmem:[%s493] sm:$0xff]
  %495 = vst [vmem:[%s492] sm:$0xff] %v494
  %s496 = scalar_lea.vmem %s3, 480
  %s497 = scalar_lea.vmem %s1, 480
  %v498 = vld [vmem:[%s497] sm:$0xff]
  %499 = vst [vmem:[%s496] sm:$0xff] %v498
  %s500 = scalar_lea.vmem %s3, 488
  %s501 = scalar_lea.vmem %s1, 488
  %v502 = vld [vmem:[%s501] sm:$0xff]
  %503 = vst [vmem:[%s500] sm:$0xff] %v502
  %s504 = scalar_lea.vmem %s3, 496
  %s505 = scalar_lea.vmem %s1, 496
  %v506 = vld [vmem:[%s505] sm:$0xff]
  %507 = vst [vmem:[%s504] sm:$0xff] %v506
  %s508 = scalar_lea.vmem %s3, 504
  %s509 = scalar_lea.vmem %s1, 504
  %v510 = vld [vmem:[%s509] sm:$0xff]
  %511 = vst [vmem:[%s508] sm:$0xff] %v510

</llo_original>
